<compile_context>
chip_gen: v7x
topology: tpu7x:2x2x1
jax: 0.10.0
libtpu: 0.0.40
codegen_flags: <defaults>
</compile_context>

<pallas_src>
import jax
import jax.numpy as jnp
from jax.experimental import pallas as pl
from jax.experimental.pallas import tpu as pltpu


def _round_up(x, m):
    return (x + m - 1) // m * m


def _choose_tile(B, tile_b_max):
    """Pick a lane-aligned batch tile; >=2 grid steps once B > 256 (megacore)."""
    if B <= 256:
        return B, 1  # single block equal to the full array extent (always legal)
    tile = min(tile_b_max, _round_up(pl.cdiv(B, 2), 128))
    return tile, pl.cdiv(B, tile)


def _value_net_kernel(x_ref, w1_ref, b1_ref, w2_ref, b2_ref, w3_ref, b3_ref,
                      o_ref):
    x = x_ref[...]                                           # (F, TB)

    # Layer 1: (32, F) @ (F, TB) -> (32, TB), lane-dense activations.
    h1 = jnp.dot(w1_ref[...], x, preferred_element_type=jnp.float32)
    h1 = jnp.maximum(h1 + b1_ref[...], 0.0)                  # (32, TB)

    # Layer 2: (32, 32) @ (32, TB) -> (32, TB).
    h2 = jnp.dot(w2_ref[...], h1, preferred_element_type=jnp.float32)
    h2 = jnp.maximum(h2 + b2_ref[...], 0.0)                  # (32, TB)

    # Layer 3: VPU broadcast-multiply + sublane reduce (no K=1 MXU matmul).
    q = jnp.sum(h2 * w3_ref[...], axis=0, keepdims=True)     # (1, TB)
    q = jnp.maximum(q + b3_ref[0, 0], 0.0)                   # ReLU kept (spec)

    o_ref[...] = q.astype(o_ref.dtype)


def value_network_forward_packed(x_fm, params, *, tile_b_max=16384):
    """Forward from a feature-major slab x_fm of shape (dim_state+dim_action, B).

    Returns q of shape (B,) (add [:, None] if the torch (B, 1) shape is needed).
    """
    x_fm = x_fm.astype(jnp.float32)
    F, B = x_fm.shape
    w1, b1 = params["w1"], params["b1"]        # (32, F), (32, 1)
    w2, b2 = params["w2"], params["b2"]        # (32, 32), (32, 1)
    w3, b3 = params["w3"], params["b3"]        # (32, 1),  (1, 1)
    assert w1.shape == (32, F)

    tile_b, grid_b = _choose_tile(B, tile_b_max)

    n_w = w1.size + b1.size + w2.size + b2.size + w3.size + b3.size
    flops = 2 * B * (F * 32 + 32 * 32 + 32)
    bytes_accessed = 4 * (F * B + B + n_w)

    def resident(arr):
        return pl.BlockSpec(arr.shape, lambda i: (0, 0))

    out = pl.pallas_call(
        _value_net_kernel,
        out_shape=jax.ShapeDtypeStruct((1, B), jnp.float32),
        grid=(grid_b,),
        in_specs=[
            pl.BlockSpec((F, tile_b), lambda i: (0, i)),        # packed inputs
            resident(w1), resident(b1),
            resident(w2), resident(b2),
            resident(w3),
            pl.BlockSpec(memory_space=pltpu.MemorySpace.SMEM),  # b3 scalar
        ],
        out_specs=pl.BlockSpec((1, tile_b), lambda i: (0, i)),
        compiler_params=pltpu.CompilerParams(
            dimension_semantics=("parallel",)),
        cost_estimate=pl.CostEstimate(
            flops=flops, transcendentals=0, bytes_accessed=bytes_accessed),
    )(x_fm, w1, b1, w2, b2, w3, b3)

    return out[0]                                              # (B,) lane-dense


def value_network_forward(state, action, params, *, tile_b_max=16384):
    """state (B, ds), action (B, da) -> q (B,).

    Packs the inputs into one feature-major (ds+da, B) slab.  In a real
    pipeline this slab should be produced upstream (replay buffer stored
    feature-major) so the transpose never materializes; here it is done once
    in the wrapper.
    """
    x_fm = jnp.concatenate(
        [state.astype(jnp.float32).T, action.astype(jnp.float32).T], axis=0)
    return value_network_forward_packed(x_fm, params, tile_b_max=tile_b_max)


def init_params(key, dim_state, dim_action):
    """Deterministic synthetic init (PyTorch-Linear-like uniform ranges)."""
    d_in = dim_state + dim_action
    ks = jax.random.split(key, 6)

    def u(k, shape, fan_in):
        bound = 1.0 / jnp.sqrt(fan_in)
        return jax.random.uniform(k, shape, jnp.float32, -bound, bound)

    return {
        "w1": u(ks[0], (32, d_in), d_in),   # torch linear1.weight layout (out, in)
        "b1": u(ks[1], (32, 1), d_in),
        "w2": u(ks[2], (32, 32), 32),       # torch linear2.weight layout (out, in)
        "b2": u(ks[3], (32, 1), 32),
        "w3": u(ks[4], (32, 1), 32),        # torch linear3.weight transposed (in, out)
        "b3": u(ks[5], (1, 1), 32),
    }


def _reference_forward(state, action, p):
    x = jnp.concatenate([state, action], axis=1)
    x = jax.nn.relu(x @ p["w1"].T + p["b1"].T)
    x = jax.nn.relu(x @ p["w2"].T + p["b2"].T)
    x = jax.nn.relu(x @ p["w3"] + p["b3"])
    return x                                                   # (B, 1)


if __name__ == "__main__":
    # Pendulum-v1: dim_state = 3, dim_action = 1.
    dim_state, dim_action = 3, 1

    key = jax.random.PRNGKey(0)
    k_p, k_s, k_a = jax.random.split(key, 3)
    params = init_params(k_p, dim_state, dim_action)

    # Small batch (single block path).
    batch = 8
    state = jax.random.normal(k_s, (batch, dim_state), jnp.float32)
    action = jax.random.normal(k_a, (batch, dim_action), jnp.float32)
    out = jax.block_until_ready(value_network_forward(state, action, params))
    ref = _reference_forward(state, action, params)
    assert out.shape == (batch,)
    assert jnp.allclose(out, ref[:, 0], atol=1e-5, rtol=1e-5)

    # Ragged multi-tile path (exercises cdiv grid + masked tail store, no pad).
    batch2 = 300
    state2 = jax.random.normal(k_s, (batch2, dim_state), jnp.float32)
    action2 = jax.random.normal(k_a, (batch2, dim_action), jnp.float32)
    out2 = jax.block_until_ready(value_network_forward(state2, action2, params))
    ref2 = _reference_forward(state2, action2, params)
    assert out2.shape == (batch2,)
    assert jnp.allclose(out2, ref2[:, 0], atol=1e-5, rtol=1e-5)

    print("KERNEL_OK")
</pallas_src>

<mosaic_0001>
module attributes {stable_mosaic.version = 11 : i64} {
  func.func @_value_net_kernel(%arg0: i32, %arg1: memref<4x8xf32, #tpu.memory_space<vmem>>, %arg2: memref<32x4xf32, #tpu.memory_space<vmem>>, %arg3: memref<32x1xf32, #tpu.memory_space<vmem>>, %arg4: memref<32x32xf32, #tpu.memory_space<vmem>>, %arg5: memref<32x1xf32, #tpu.memory_space<vmem>>, %arg6: memref<32x1xf32, #tpu.memory_space<vmem>>, %arg7: memref<1x1xf32, #tpu.memory_space<smem>>, %arg8: memref<1x8xf32, #tpu.memory_space<vmem>>) attributes {dimension_semantics = [#tpu.dimension_semantics<parallel>], iteration_bounds = array<i64: 1>, scalar_prefetch = 0 : i64, scratch_operands = 0 : i64, tpu.core_type = #tpu.core_type<tc>, window_params = [{transform_indices = @transform_0, window_bounds = array<i64: 4, 8>}, {pipeline_mode = #tpu.pipeline_mode<synchronous>, transform_indices = @transform_1, window_bounds = array<i64: 32, 4>}, {pipeline_mode = #tpu.pipeline_mode<synchronous>, transform_indices = @transform_2, window_bounds = array<i64: 32, 1>}, {pipeline_mode = #tpu.pipeline_mode<synchronous>, transform_indices = @transform_3, window_bounds = array<i64: 32, 32>}, {pipeline_mode = #tpu.pipeline_mode<synchronous>, transform_indices = @transform_4, window_bounds = array<i64: 32, 1>}, {pipeline_mode = #tpu.pipeline_mode<synchronous>, transform_indices = @transform_5, window_bounds = array<i64: 32, 1>}, {transform_indices = @transform_6, window_bounds = array<i64: 1, 1>}, {transform_indices = @transform_7, window_bounds = array<i64: 1, 8>}]} {
    %c0 = arith.constant 0 : index
    %c0_0 = arith.constant 0 : index
    %0 = vector.load %arg1[%c0, %c0_0] : memref<4x8xf32, #tpu.memory_space<vmem>>, vector<4x8xf32>
    %c0_1 = arith.constant 0 : index
    %c0_2 = arith.constant 0 : index
    %1 = vector.load %arg2[%c0_1, %c0_2] : memref<32x4xf32, #tpu.memory_space<vmem>>, vector<32x4xf32>
    %cst = arith.constant dense<0.000000e+00> : vector<32x8xf32>
    %2 = tpu.matmul %1, %0, %cst {dimension_numbers = #tpu.dot_dimension_numbers<[1], [0], [0], [1], [0, 0, 1, 1], [], []>} : vector<32x4xf32>, vector<4x8xf32>, vector<32x8xf32> -> vector<32x8xf32>
    %c0_3 = arith.constant 0 : index
    %c0_4 = arith.constant 0 : index
    %3 = vector.load %arg3[%c0_3, %c0_4] : memref<32x1xf32, #tpu.memory_space<vmem>>, vector<32x1xf32>
    %4 = vector.broadcast %3 : vector<32x1xf32> to vector<32x8xf32>
    %5 = arith.addf %2, %4 : vector<32x8xf32>
    %cst_5 = arith.constant 0.000000e+00 : f32
    %6 = vector.broadcast %cst_5 : f32 to vector<32x8xf32>
    %7 = arith.maximumf %5, %6 : vector<32x8xf32>
    %c0_6 = arith.constant 0 : index
    %c0_7 = arith.constant 0 : index
    %8 = vector.load %arg4[%c0_6, %c0_7] : memref<32x32xf32, #tpu.memory_space<vmem>>, vector<32x32xf32>
    %cst_8 = arith.constant dense<0.000000e+00> : vector<32x8xf32>
    %9 = tpu.matmul %8, %7, %cst_8 {dimension_numbers = #tpu.dot_dimension_numbers<[1], [0], [0], [1], [0, 0, 1, 1], [], []>} : vector<32x32xf32>, vector<32x8xf32>, vector<32x8xf32> -> vector<32x8xf32>
    %c0_9 = arith.constant 0 : index
    %c0_10 = arith.constant 0 : index
    %10 = vector.load %arg5[%c0_9, %c0_10] : memref<32x1xf32, #tpu.memory_space<vmem>>, vector<32x1xf32>
    %11 = vector.broadcast %10 : vector<32x1xf32> to vector<32x8xf32>
    %12 = arith.addf %9, %11 : vector<32x8xf32>
    %cst_11 = arith.constant 0.000000e+00 : f32
    %13 = vector.broadcast %cst_11 : f32 to vector<32x8xf32>
    %14 = arith.maximumf %12, %13 : vector<32x8xf32>
    %c0_12 = arith.constant 0 : index
    %c0_13 = arith.constant 0 : index
    %15 = vector.load %arg6[%c0_12, %c0_13] : memref<32x1xf32, #tpu.memory_space<vmem>>, vector<32x1xf32>
    %16 = vector.broadcast %15 : vector<32x1xf32> to vector<32x8xf32>
    %17 = arith.mulf %14, %16 : vector<32x8xf32>
    %cst_14 = arith.constant dense<0.000000e+00> : vector<8xf32>
    %18 = vector.multi_reduction <add>, %17, %cst_14 [0] : vector<32x8xf32> to vector<8xf32>
    %19 = vector.shape_cast %18 : vector<8xf32> to vector<1x8xf32>
    %c0_15 = arith.constant 0 : index
    %c0_16 = arith.constant 0 : index
    %20 = memref.load %arg7[%c0_15, %c0_16] : memref<1x1xf32, #tpu.memory_space<smem>>
    %21 = vector.broadcast %20 : f32 to vector<1x8xf32>
    %22 = arith.addf %19, %21 : vector<1x8xf32>
    %cst_17 = arith.constant 0.000000e+00 : f32
    %23 = vector.broadcast %cst_17 : f32 to vector<1x8xf32>
    %24 = arith.maximumf %22, %23 : vector<1x8xf32>
    %c0_18 = arith.constant 0 : index
    %c0_19 = arith.constant 0 : index
    %25 = vector.load %arg8[%c0_18, %c0_19] : memref<1x8xf32, #tpu.memory_space<vmem>>, vector<1x8xf32>
    tpu.vector_store %arg8[%c0_18, %c0_19], %24 {strides = array<i32>} : memref<1x8xf32, #tpu.memory_space<vmem>>, vector<1x8xf32>,
    return
  }
  func.func @transform_0(%arg0: i32) -> (i32, i32) {
    %c0_i32 = arith.constant 0 : i32
    %c0_i32_0 = arith.constant 0 : i32
    return %c0_i32, %arg0 : i32, i32
  }
  func.func @transform_1(%arg0: i32) -> (i32, i32) {
    %c0_i32 = arith.constant 0 : i32
    %c0_i32_0 = arith.constant 0 : i32
    %c0_i32_1 = arith.constant 0 : i32
    return %c0_i32, %c0_i32_0 : i32, i32
  }
  func.func @transform_2(%arg0: i32) -> (i32, i32) {
    %c0_i32 = arith.constant 0 : i32
    %c0_i32_0 = arith.constant 0 : i32
    %c0_i32_1 = arith.constant 0 : i32
    return %c0_i32, %c0_i32_0 : i32, i32
  }
  func.func @transform_3(%arg0: i32) -> (i32, i32) {
    %c0_i32 = arith.constant 0 : i32
    %c0_i32_0 = arith.constant 0 : i32
    %c0_i32_1 = arith.constant 0 : i32
    return %c0_i32, %c0_i32_0 : i32, i32
  }
  func.func @transform_4(%arg0: i32) -> (i32, i32) {
    %c0_i32 = arith.constant 0 : i32
    %c0_i32_0 = arith.constant 0 : i32
    %c0_i32_1 = arith.constant 0 : i32
    return %c0_i32, %c0_i32_0 : i32, i32
  }
  func.func @transform_5(%arg0: i32) -> (i32, i32) {
    %c0_i32 = arith.constant 0 : i32
    %c0_i32_0 = arith.constant 0 : i32
    %c0_i32_1 = arith.constant 0 : i32
    return %c0_i32, %c0_i32_0 : i32, i32
  }
  func.func @transform_6(%arg0: i32) -> (i32, i32) {
    %c0_i32 = arith.constant 0 : i32
    %c0_i32_0 = arith.constant 0 : i32
    %c0_i32_1 = arith.constant 0 : i32
    return %c0_i32, %c0_i32_0 : i32, i32
  }
  func.func @transform_7(%arg0: i32) -> (i32, i32) {
    %c0_i32 = arith.constant 0 : i32
    %c0_i32_0 = arith.constant 0 : i32
    return %c0_i32, %arg0 : i32, i32
  }
}

</mosaic_0001>

<llo_original>
// kernel: tpu_custom_call.1
$region0: #{tpu_custom_call.1}
  #allocation0 [shape = 'u32[]', space=smem, size = 0x4, offset = 0x4, fixed_abs, tag = 'smem constant byte address 0x4 - core index']
  #allocation1 [shape = 'u32[144,128]{1,0:T(1,128)}', space=vmem, size = 0x12000, scoped, tag = 'internal scratch']
  #allocation2 [shape = 'f32[1,1]{1,0:T(1,128)S(6)}', space=smem, size = 0x200, scoped, tag = 'scoped memory for tpu_custom_call.1']
  %s0 = inlined_call_operand.vmem [shape: f32[4,8], index: 0, kind: input, shape index: {}]
  %s1 = inlined_call_operand.vmem [shape: f32[32,4], index: 1, kind: input, shape index: {}]
  %s2 = inlined_call_operand.vmem [shape: f32[32,1], index: 2, kind: input, shape index: {}]
  %s3 = inlined_call_operand.vmem [shape: f32[32,32], index: 3, kind: input, shape index: {}]
  %s4 = inlined_call_operand.vmem [shape: f32[32,1], index: 4, kind: input, shape index: {}]
  %s5 = inlined_call_operand.vmem [shape: f32[32,1], index: 5, kind: input, shape index: {}]
  %s6 = inlined_call_operand.<no memory space> [shape: f32[1,1], index: 6, kind: input, shape index: {}]
  %s7 = inlined_call_operand.hbm [shape: f32[1,8], index: 7, kind: output, shape index: {}]
  %s8 = sld [smem:[#allocation0]]
  $region38: #{tpu_custom_call.1} parent=0
    _
  %s10 = ssub.s32 1, %s8
  %s11 = scalar_select 0, %s10, %s8
  %12 = sst [smem:[#allocation2]] %s6
  $region1: #{tpu_custom_call.1} parent=0
    #allocation3 [shape = 'u8[512]{0}', space=vmem, size = 0x400, scoped, tag = 'output window, operand 0, single buffered']
    #allocation4 [shape = 's32[1]{0}', space=sflag, size = 0x4, scoped, tag = 'scoped memory for tpu_custom_call.1']
    %13 = vsyncpa [#allocation4], 0
    // Predicated region
    $region2: #{tpu_custom_call.1} parent=1 // pred_check
      _
    $region3: #{tpu_custom_call.1} parent=1 // pred_check_branch
      %15 = sbr.rel (0) target = $region5
    $region4: #{tpu_custom_call.1} parent=1 // pred_region
      _
    $region5: #{tpu_custom_call.1} parent=1 // pred_fallthru
      _
    // Predicated region
    $region6: #{tpu_custom_call.1} parent=1 // pred_check
      _
    $region7: #{tpu_custom_call.1} parent=1 // pred_check_branch
      %17 = sbr.rel (0) target = $region9
    $region8: #{tpu_custom_call.1} parent=1 // pred_region
      _
    $region9: #{tpu_custom_call.1} parent=1 // pred_fallthru
      _
    // Predicated region
    $region10: #{tpu_custom_call.1} parent=1 // pred_check
      _
    $region11: #{tpu_custom_call.1} parent=1 // pred_check_branch
      %19 = sbr.rel (0) target = $region13
    $region12: #{tpu_custom_call.1} parent=1 // pred_region
      _
    $region13: #{tpu_custom_call.1} parent=1 // pred_fallthru
      _
    // Predicated region
    $region14: #{tpu_custom_call.1} parent=1 // pred_check
      _
    $region15: #{tpu_custom_call.1} parent=1 // pred_check_branch
      %21 = sbr.rel (0) target = $region17
    $region16: #{tpu_custom_call.1} parent=1 // pred_region
      _
    $region17: #{tpu_custom_call.1} parent=1 // pred_fallthru
      _
    // Predicated region
    $region18: #{tpu_custom_call.1} parent=1 // pred_check
      _
    $region19: #{tpu_custom_call.1} parent=1 // pred_check_branch
      %23 = sbr.rel (0) target = $region21
    $region20: #{tpu_custom_call.1} parent=1 // pred_region
      _
    $region21: #{tpu_custom_call.1} parent=1 // pred_fallthru
      _
    // Predicated region
    $region22: #{tpu_custom_call.1} parent=1 // pred_check
      _
    $region23: #{tpu_custom_call.1} parent=1 // pred_check_branch
      %25 = sbr.rel (0) target = $region25
    $region24: #{tpu_custom_call.1} parent=1 // pred_region
      _
    $region25: #{tpu_custom_call.1} parent=1 // pred_fallthru
      _
    // Predicated region
    $region26: #{tpu_custom_call.1} parent=1 // pred_check
      _
    $region27: #{tpu_custom_call.1} parent=1 // pred_check_branch
      %27 = sbr.rel (0) target = $region29
    $region28: #{tpu_custom_call.1} parent=1 // pred_region
      _
    $region29: #{tpu_custom_call.1} parent=1 // pred_fallthru
      _
    %v28 = vld [vmem:[%s0] sm:$0xf]
    %v29 = vld [vmem:[%s1] sm:$0xff]
    %v30 = vld [vmem:[%s1 + $0x8] sm:$0xff]
    %v31 = vld [vmem:[%s1 + $0x10] sm:$0xff]
    %v32 = vld [vmem:[%s1 + $0x18] sm:$0xff]
    %v33 = vld [vmem:[%s2] sm:$0xff]
    %v34 = vld [vmem:[%s2 + $0x8] sm:$0xff]
    %v35 = vld [vmem:[%s2 + $0x10] sm:$0xff]
    %v36 = vld [vmem:[%s2 + $0x18] sm:$0xff]
    %38 = vset.pattern.permute.xlu0 0
    %39 = vperm.xlu0 %38, %v33
    %v40 = vpop.permute.xlu0 %39
    %43 = vset.pattern.permute.xlu0 0
    %44 = vperm.xlu0 %43, %v34
    %v45 = vpop.permute.xlu0 %44
    %48 = vset.pattern.permute.xlu0 0
    %49 = vperm.xlu0 %48, %v35
    %v50 = vpop.permute.xlu0 %49
    %53 = vset.pattern.permute.xlu0 0
    %54 = vperm.xlu0 %53, %v36
    %v55 = vpop.permute.xlu0 %54
    %vm57 = vcmask 31744
    %v59 = vsel %vm57, %v29, 0
    %v62 = vsel %vm57, %v30, 0
    %v65 = vsel %vm57, %v31, 0
    %v68 = vsel %vm57, %v32, 0
    %vm70 = vcmask 1043456
    %v72 = vsel %vm70, %v28, 0
    %74 = vmatprep.subr.mxu0 0.0
    %75 = vmatpush1.msra.mxu0 %v72
    %76 = vmatprep.subr.mxu0 0.0
    %77 = vmatpush1.msra.mxu0 0.0
    %78 = vmatprep.subr.mxu0 0.0
    %79 = vmatpush1.msra.mxu0 0.0
    %80 = vmatprep.subr.mxu0 0.0
    %81 = vmatpush1.msra.mxu0 0.0
    %82 = vmatprep.subr.mxu0 0.0
    %83 = vmatpush1.msra.mxu0 0.0
    %84 = vmatprep.subr.mxu0 0.0
    %85 = vmatpush1.msra.mxu0 0.0
    %86 = vmatprep.subr.mxu0 0.0
    %87 = vmatpush1.msra.mxu0 0.0
    %88 = vmatprep.subr.mxu0 0.0
    %89 = vmatpush1.msra.mxu0 0.0
    %90 = vmatprep.subr.mxu0 0.0
    %91 = vmatpush1.msra.mxu0 0.0
    %92 = vmatprep.subr.mxu0 0.0
    %93 = vmatpush1.msra.mxu0 0.0
    %94 = vmatprep.subr.mxu0 0.0
    %95 = vmatpush1.msra.mxu0 0.0
    %96 = vmatprep.subr.mxu0 0.0
    %97 = vmatpush1.msra.mxu0 0.0
    %98 = vmatprep.subr.mxu0 0.0
    %99 = vmatpush1.msra.mxu0 0.0
    %100 = vmatprep.subr.mxu0 0.0
    %101 = vmatpush1.msra.mxu0 0.0
    %102 = vmatprep.subr.mxu0 0.0
    %103 = vmatpush1.msra.mxu0 0.0
    %104 = vmatprep.subr.mxu0 0.0
    %105 = vmatpush1.msra.mxu0 0.0
    %106 = vmatprep.subr.mxu0 0.0
    %107 = vmatpush1.msra.mxu0 0.0
    %108 = vmatprep.subr.mxu0 0.0
    %109 = vmatpush1.msra.mxu0 0.0
    %110 = vmatprep.subr.mxu0 0.0
    %111 = vmatpush1.msra.mxu0 0.0
    %112 = vmatprep.subr.mxu0 0.0
    %113 = vmatpush1.msra.mxu0 0.0
    %114 = vmatprep.subr.mxu0 0.0
    %115 = vmatpush1.msra.mxu0 0.0
    %116 = vmatprep.subr.mxu0 0.0
    %117 = vmatpush1.msra.mxu0 0.0
    %118 = vmatprep.subr.mxu0 0.0
    %119 = vmatpush1.msra.mxu0 0.0
    %120 = vmatprep.subr.mxu0 0.0
    %121 = vmatpush1.msra.mxu0 0.0
    %122 = vmatprep.subr.mxu0 0.0
    %123 = vmatpush1.msra.mxu0 0.0
    %124 = vmatprep.subr.mxu0 0.0
    %125 = vmatpush1.msra.mxu0 0.0
    %126 = vmatprep.subr.mxu0 0.0
    %127 = vmatpush1.msra.mxu0 0.0
    %128 = vmatprep.subr.mxu0 0.0
    %129 = vmatpush1.msra.mxu0 0.0
    %130 = vmatprep.subr.mxu0 0.0
    %131 = vmatpush1.msra.mxu0 0.0
    %132 = vmatprep.subr.mxu0 0.0
    %133 = vmatpush1.msra.mxu0 0.0
    %134 = vmatprep.subr.mxu0 0.0
    %135 = vmatpush1.msra.mxu0 0.0
    %136 = vmatprep.subr.mxu0 0.0
    %137 = vmatpush1.msra.mxu0 0.0
    %138 = vmatprep.mubr.f32.mxu0 0.0
    %139 = vmatmul.mubr.f32.gmra.mrb[0].mxu0 %v59
    %v140 = vpop.f32.mrb[0].mxu0
    %v141 = vadd.f32 %v40, %v140
    %v142 = vpop.f32.mrb[0].mxu0
    %143 = vmatprep.mubr.f32.mxu0 0.0
    %144 = vmatmul.mubr.f32.gmra.mrb[0].mxu0 %v62
    %v145 = vpop.f32.mrb[0].mxu0
    %v146 = vadd.f32 %v45, %v145
    %v147 = vpop.f32.mrb[0].mxu0
    %148 = vmatprep.mubr.f32.mxu0 0.0
    %149 = vmatmul.mubr.f32.gmra.mrb[0].mxu0 %v65
    %v150 = vpop.f32.mrb[0].mxu0
    %v151 = vadd.f32 %v50, %v150
    %v152 = vpop.f32.mrb[0].mxu0
    %153 = vmatprep.mubr.f32.mxu0 0.0
    %154 = vmatmul.mubr.f32.gmra.mrb[0].mxu0 %v68
    %v155 = vpop.f32.mrb[0].mxu0
    %v156 = vadd.f32 %v55, %v155
    %v157 = vpop.f32.mrb[0].mxu0
    %158 = vdwg.mxu0
    %v159 = vmax.f32 %v141, 0.0
    %v160 = vmax.f32 %v146, 0.0
    %v161 = vmax.f32 %v151, 0.0
    %v162 = vmax.f32 %v156, 0.0
    %v163 = vld [vmem:[%s3] sm:$0xff]
    %v164 = vld [vmem:[%s3 + $0x8] sm:$0xff]
    %v165 = vld [vmem:[%s3 + $0x10] sm:$0xff]
    %v166 = vld [vmem:[%s3 + $0x18] sm:$0xff]
    %v167 = vld [vmem:[%s4] sm:$0xff]
    %v168 = vld [vmem:[%s4 + $0x8] sm:$0xff]
    %v169 = vld [vmem:[%s4 + $0x10] sm:$0xff]
    %v170 = vld [vmem:[%s4 + $0x18] sm:$0xff]
    %172 = vset.pattern.permute.xlu0 0
    %173 = vperm.xlu0 %172, %v167
    %v174 = vpop.permute.xlu0 %173
    %177 = vset.pattern.permute.xlu0 0
    %178 = vperm.xlu0 %177, %v168
    %v179 = vpop.permute.xlu0 %178
    %182 = vset.pattern.permute.xlu0 0
    %183 = vperm.xlu0 %182, %v169
    %v184 = vpop.permute.xlu0 %183
    %187 = vset.pattern.permute.xlu0 0
    %188 = vperm.xlu0 %187, %v170
    %v189 = vpop.permute.xlu0 %188
    %vm191 = vcmask 261120
    %v193 = vsel %vm191, %v163, 0
    %v196 = vsel %vm191, %v164, 0
    %v199 = vsel %vm191, %v165, 0
    %v202 = vsel %vm191, %v166, 0
    %204 = vmatprep.subr.mxu0 0.0
    %205 = vmatpush1.msra.mxu0 %v159
    %206 = vmatprep.subr.mxu0 0.0
    %207 = vmatpush1.msra.mxu0 %v160
    %208 = vmatprep.subr.mxu0 0.0
    %209 = vmatpush1.msra.mxu0 %v161
    %210 = vmatprep.subr.mxu0 0.0
    %211 = vmatpush1.msra.mxu0 %v162
    %212 = vmatprep.subr.mxu0 0.0
    %213 = vmatpush1.msra.mxu0 0.0
    %214 = vmatprep.subr.mxu0 0.0
    %215 = vmatpush1.msra.mxu0 0.0
    %216 = vmatprep.subr.mxu0 0.0
    %217 = vmatpush1.msra.mxu0 0.0
    %218 = vmatprep.subr.mxu0 0.0
    %219 = vmatpush1.msra.mxu0 0.0
    %220 = vmatprep.subr.mxu0 0.0
    %221 = vmatpush1.msra.mxu0 0.0
    %222 = vmatprep.subr.mxu0 0.0
    %223 = vmatpush1.msra.mxu0 0.0
    %224 = vmatprep.subr.mxu0 0.0
    %225 = vmatpush1.msra.mxu0 0.0
    %226 = vmatprep.subr.mxu0 0.0
    %227 = vmatpush1.msra.mxu0 0.0
    %228 = vmatprep.subr.mxu0 0.0
    %229 = vmatpush1.msra.mxu0 0.0
    %230 = vmatprep.subr.mxu0 0.0
    %231 = vmatpush1.msra.mxu0 0.0
    %232 = vmatprep.subr.mxu0 0.0
    %233 = vmatpush1.msra.mxu0 0.0
    %234 = vmatprep.subr.mxu0 0.0
    %235 = vmatpush1.msra.mxu0 0.0
    %236 = vmatprep.subr.mxu0 0.0
    %237 = vmatpush1.msra.mxu0 0.0
    %238 = vmatprep.subr.mxu0 0.0
    %239 = vmatpush1.msra.mxu0 0.0
    %240 = vmatprep.subr.mxu0 0.0
    %241 = vmatpush1.msra.mxu0 0.0
    %242 = vmatprep.subr.mxu0 0.0
    %243 = vmatpush1.msra.mxu0 0.0
    %244 = vmatprep.subr.mxu0 0.0
    %245 = vmatpush1.msra.mxu0 0.0
    %246 = vmatprep.subr.mxu0 0.0
    %247 = vmatpush1.msra.mxu0 0.0
    %248 = vmatprep.subr.mxu0 0.0
    %249 = vmatpush1.msra.mxu0 0.0
    %250 = vmatprep.subr.mxu0 0.0
    %251 = vmatpush1.msra.mxu0 0.0
    %252 = vmatprep.subr.mxu0 0.0
    %253 = vmatpush1.msra.mxu0 0.0
    %254 = vmatprep.subr.mxu0 0.0
    %255 = vmatpush1.msra.mxu0 0.0
    %256 = vmatprep.subr.mxu0 0.0
    %257 = vmatpush1.msra.mxu0 0.0
    %258 = vmatprep.subr.mxu0 0.0
    %259 = vmatpush1.msra.mxu0 0.0
    %260 = vmatprep.subr.mxu0 0.0
    %261 = vmatpush1.msra.mxu0 0.0
    %262 = vmatprep.subr.mxu0 0.0
    %263 = vmatpush1.msra.mxu0 0.0
    %264 = vmatprep.subr.mxu0 0.0
    %265 = vmatpush1.msra.mxu0 0.0
    %266 = vmatprep.subr.mxu0 0.0
    %267 = vmatpush1.msra.mxu0 0.0
    %268 = vmatprep.mubr.f32.mxu0 0.0
    %269 = vmatmul.mubr.f32.gmra.mrb[0].mxu0 %v193
    %v270 = vpop.f32.mrb[0].mxu0
    %v271 = vadd.f32 %v174, %v270
    %v272 = vpop.f32.mrb[0].mxu0
    %273 = vmatprep.mubr.f32.mxu0 0.0
    %274 = vmatmul.mubr.f32.gmra.mrb[0].mxu0 %v196
    %v275 = vpop.f32.mrb[0].mxu0
    %v276 = vadd.f32 %v179, %v275
    %v277 = vpop.f32.mrb[0].mxu0
    %278 = vmatprep.mubr.f32.mxu0 0.0
    %279 = vmatmul.mubr.f32.gmra.mrb[0].mxu0 %v199
    %v280 = vpop.f32.mrb[0].mxu0
    %v281 = vadd.f32 %v184, %v280
    %v282 = vpop.f32.mrb[0].mxu0
    %283 = vmatprep.mubr.f32.mxu0 0.0
    %284 = vmatmul.mubr.f32.gmra.mrb[0].mxu0 %v202
    %v285 = vpop.f32.mrb[0].mxu0
    %v286 = vadd.f32 %v189, %v285
    %v287 = vpop.f32.mrb[0].mxu0
    %288 = vdwg.mxu0
    %v289 = vmax.f32 %v271, 0.0
    %v290 = vmax.f32 %v276, 0.0
    %v291 = vmax.f32 %v281, 0.0
    %v292 = vmax.f32 %v286, 0.0
    %v293 = vld [vmem:[%s5] sm:$0xff]
    %v294 = vld [vmem:[%s5 + $0x8] sm:$0xff]
    %v295 = vld [vmem:[%s5 + $0x10] sm:$0xff]
    %v296 = vld [vmem:[%s5 + $0x18] sm:$0xff]
    %298 = vset.pattern.permute.xlu0 0
    %299 = vperm.xlu0 %298, %v293
    %v300 = vpop.permute.xlu0 %299
    %303 = vset.pattern.permute.xlu0 0
    %304 = vperm.xlu0 %303, %v294
    %v305 = vpop.permute.xlu0 %304
    %308 = vset.pattern.permute.xlu0 0
    %309 = vperm.xlu0 %308, %v295
    %v310 = vpop.permute.xlu0 %309
    %313 = vset.pattern.permute.xlu0 0
    %314 = vperm.xlu0 %313, %v296
    %v315 = vpop.permute.xlu0 %314
    %v317 = vmul.f32 %v289, %v300
    %v318 = vmul.f32 %v290, %v305
    %v319 = vmul.f32 %v291, %v310
    %v320 = vmul.f32 %v292, %v315
    %vm321 = vcmask 64512
    %v322 = vsel %vm321, %v317, 0.0
    %v323 = vsel %vm321, %v318, 0.0
    %v324 = vadd.f32 %v322, %v323
    %v325 = vsel %vm321, %v319, 0.0
    %v326 = vadd.f32 %v324, %v325
    %v327 = vsel %vm321, %v320, 0.0
    %v328 = vadd.f32 %v326, %v327
    %v329 = vrot.slane %v328, 4
    %v330 = vadd.f32 %v328, %v329
    %v331 = vrot.slane %v330, 2
    %v332 = vadd.f32 %v330, %v331
    %v333 = vrot.slane %v332, 1
    %v334 = vadd.f32 %v332, %v333
    %s335 = sld [smem:[#allocation2]]
    %v336 = vstv %s335
    %v337 = vadd.f32 %v334, %v336
    %v338 = vmax.f32 %v337, 0.0
    %vm339 = vcmask 57344
    %340 = vst.msk [vmem:[#allocation3] sm:$0x1] %vm339, %v338
    // Predicated region
    $region30: #{tpu_custom_call.1} parent=1 // pred_check
      _
    $region31: #{tpu_custom_call.1} parent=1 // pred_check_branch
      %342 = sbr.rel (0) target = $region33
    $region32: #{tpu_custom_call.1} parent=1 // pred_region
      %s344 = ssub.s32 16, 16
      %345 = vsyncadd [#allocation4], %s344
      %s347 = sshll.u32 [#allocation3], 4
      %s348 = int_to_ptr.vmem [resolvable:$true] %s347
      %350 = dma.vmem_to_hbm [thread:$0]  %s348, 16, %s7, [#allocation4]
    $region33: #{tpu_custom_call.1} parent=1 // pred_fallthru
      _
    // Predicated region
    $region34: #{tpu_custom_call.1} parent=1 // pred_check
      _
    $region35: #{tpu_custom_call.1} parent=1 // pred_check_branch
      %352 = sbr.rel (0) target = $region37
    $region36: #{tpu_custom_call.1} parent=1 // pred_region
      %353 = dma.done [#allocation4], 16
    $region37: #{tpu_custom_call.1} parent=1 // pred_fallthru
      _
    %354 = vsyncpa [#allocation4], 1

</llo_original>
